<compile_context>
chip_gen: v6e
topology: v6e:2x2x1
jax: 0.10.0
libtpu: 0.0.40
codegen_flags: <defaults>
</compile_context>

<pallas_src>
import functools

import jax
import jax.numpy as jnp
from jax.experimental import pallas as pl
from jax.experimental.pallas import tpu as pltpu


_EPS = 1e-12  # matches torch.nn.functional.normalize default eps


def _round_up(v: int, m: int) -> int:
    return ((v + m - 1) // m) * m


def normed_linear_kernel(x_ref, w_ref, o_ref):
    # Operands stay in their native dtype so the MXU runs at full rate;
    # accumulation is f32.
    x = x_ref[...]                                   # (tm, K)
    w = w_ref[...]                                   # (K, tn)
    acc = jnp.dot(x, w, preferred_element_type=jnp.float32)   # (tm, tn) on MXU

    # Norms computed in f32; normalization commutes with the matmul so it is
    # applied as a cheap diagonal scaling of the output tile.
    xf = x.astype(jnp.float32)
    wf = w.astype(jnp.float32)
    x_sq = jnp.sum(xf * xf, axis=1, keepdims=True)   # (tm, 1)
    w_sq = jnp.sum(wf * wf, axis=0, keepdims=True)   # (1, tn)

    # rsqrt(max(||.||^2, eps^2)) == 1 / max(||.||, eps)  -> exact torch parity
    # (EUP rsqrt, no full-tile divides).
    x_scale = jax.lax.rsqrt(jnp.maximum(x_sq, _EPS * _EPS))
    w_scale = jax.lax.rsqrt(jnp.maximum(w_sq, _EPS * _EPS))

    o_ref[...] = (acc * x_scale * w_scale).astype(o_ref.dtype)


@functools.partial(jax.jit, static_argnames=("tm", "tn"))
def normed_linear(x: jax.Array, weight: jax.Array, *, tm: int = 256, tn: int = 256):
    n, k = x.shape
    k2, out_f = weight.shape
    assert k == k2, (k, k2)

    # Tile sizes: sublane-aligned rows, lane-dense (multiple-of-128) columns.
    tm = min(tm, _round_up(n, 8))
    tn = min(tn, _round_up(out_f, 128))

    n_pad = _round_up(n, tm)
    out_pad = _round_up(out_f, tn)

    x_p = jnp.pad(x, ((0, n_pad - n), (0, 0))) if n_pad != n else x
    w_p = (
        jnp.pad(weight, ((0, 0), (0, out_pad - out_f)))
        if out_pad != out_f
        else weight
    )

    grid = (n_pad // tm, out_pad // tn)

    out = pl.pallas_call(
        normed_linear_kernel,
        out_shape=jax.ShapeDtypeStruct((n_pad, out_pad), x.dtype),
        grid_spec=pltpu.PrefetchScalarGridSpec(
            num_scalar_prefetch=0,
            grid=grid,
            in_specs=[
                pl.BlockSpec((tm, k), lambda i, j: (i, 0)),   # x row-tile, full K
                pl.BlockSpec((k, tn), lambda i, j: (0, j)),   # w col-tile, full K
            ],
            out_specs=pl.BlockSpec((tm, tn), lambda i, j: (i, j)),
        ),
        compiler_params=pltpu.CompilerParams(
            dimension_semantics=("parallel", "parallel"),
            vmem_limit_bytes=64 * 1024 * 1024,
        ),
    )(x_p, w_p)

    return out[:n, :out_f]


def init_normed_linear_weight(key, in_features, out_features):
    """Deterministic re-implementation of:
       torch.Tensor(in,out).uniform_(-1,1).renorm_(2, 1, 1e-5).mul_(1e5)
    i.e. each column is rescaled so its L2 norm is (at most) 1e-5, then *1e5,
    leaving every column with approximately unit L2 norm."""
    w = jax.random.uniform(
        key, (in_features, out_features), minval=-1.0, maxval=1.0, dtype=jnp.float32
    )
    col_norm = jnp.sqrt(jnp.sum(w * w, axis=0, keepdims=True))
    scale = jnp.where(col_norm > 1e-5, 1e-5 / (col_norm + 1e-7), 1.0)
    return w * scale * 1e5


def normed_linear_ref(x, w):
    eps = 1e-12
    xn = x / jnp.maximum(jnp.sqrt(jnp.sum(x * x, axis=1, keepdims=True)), eps)
    wn = w / jnp.maximum(jnp.sqrt(jnp.sum(w * w, axis=0, keepdims=True)), eps)
    return xn @ wn


if __name__ == "__main__":
    key = jax.random.PRNGKey(0)
    k_x, k_w = jax.random.split(key)

    batch = 8
    in_features = 32
    out_features = 64

    x = jax.random.normal(k_x, (batch, in_features), dtype=jnp.float32)
    weight = init_normed_linear_weight(k_w, in_features, out_features)

    out = jax.block_until_ready(normed_linear(x, weight))
    ref = normed_linear_ref(x, weight)

    assert out.shape == (batch, out_features), out.shape
    assert jnp.allclose(out, ref, atol=1e-5, rtol=1e-5), (
        f"max abs err = {jnp.max(jnp.abs(out - ref))}"
    )

    print("KERNEL_OK")
</pallas_src>

<mosaic_0001>
module attributes {stable_mosaic.version = 11 : i64} {
  func.func @normed_linear_kernel(%arg0: i32, %arg1: i32, %arg2: memref<8x32xf32, #tpu.memory_space<vmem>>, %arg3: memref<32x128xf32, #tpu.memory_space<vmem>>, %arg4: memref<8x128xf32, #tpu.memory_space<vmem>>) attributes {dimension_semantics = [#tpu.dimension_semantics<parallel>, #tpu.dimension_semantics<parallel>], iteration_bounds = array<i64: 1, 1>, scalar_prefetch = 0 : i64, scratch_operands = 0 : i64, tpu.core_type = #tpu.core_type<tc>, window_params = [{transform_indices = @transform_0, window_bounds = array<i64: 8, 32>}, {transform_indices = @transform_1, window_bounds = array<i64: 32, 128>}, {transform_indices = @transform_2, window_bounds = array<i64: 8, 128>}]} {
    %c0 = arith.constant 0 : index
    %c0_0 = arith.constant 0 : index
    %0 = vector.load %arg2[%c0, %c0_0] : memref<8x32xf32, #tpu.memory_space<vmem>>, vector<8x32xf32>
    %c0_1 = arith.constant 0 : index
    %c0_2 = arith.constant 0 : index
    %1 = vector.load %arg3[%c0_1, %c0_2] : memref<32x128xf32, #tpu.memory_space<vmem>>, vector<32x128xf32>
    %cst = arith.constant dense<0.000000e+00> : vector<8x128xf32>
    %2 = tpu.matmul %0, %1, %cst {dimension_numbers = #tpu.dot_dimension_numbers<[1], [0], [0], [1], [0, 0, 1, 1], [], []>} : vector<8x32xf32>, vector<32x128xf32>, vector<8x128xf32> -> vector<8x128xf32>
    %3 = arith.mulf %0, %0 : vector<8x32xf32>
    %cst_3 = arith.constant dense<0.000000e+00> : vector<8xf32>
    %4 = vector.multi_reduction <add>, %3, %cst_3 [1] : vector<8x32xf32> to vector<8xf32>
    %5 = vector.shape_cast %4 : vector<8xf32> to vector<8x1xf32>
    %6 = arith.mulf %1, %1 : vector<32x128xf32>
    %cst_4 = arith.constant dense<0.000000e+00> : vector<128xf32>
    %7 = vector.multi_reduction <add>, %6, %cst_4 [0] : vector<32x128xf32> to vector<128xf32>
    %8 = vector.shape_cast %7 : vector<128xf32> to vector<1x128xf32>
    %cst_5 = arith.constant 1.000000e-24 : f32
    %9 = vector.broadcast %cst_5 : f32 to vector<8x1xf32>
    %10 = arith.maximumf %5, %9 : vector<8x1xf32>
    %11 = math.rsqrt %10 : vector<8x1xf32>
    %cst_6 = arith.constant 1.000000e-24 : f32
    %12 = vector.broadcast %cst_6 : f32 to vector<1x128xf32>
    %13 = arith.maximumf %8, %12 : vector<1x128xf32>
    %14 = math.rsqrt %13 : vector<1x128xf32>
    %15 = vector.broadcast %11 : vector<8x1xf32> to vector<8x128xf32>
    %16 = arith.mulf %2, %15 : vector<8x128xf32>
    %17 = vector.broadcast %14 : vector<1x128xf32> to vector<8x128xf32>
    %18 = arith.mulf %16, %17 : vector<8x128xf32>
    %c0_7 = arith.constant 0 : index
    %c0_8 = arith.constant 0 : index
    %19 = vector.load %arg4[%c0_7, %c0_8] : memref<8x128xf32, #tpu.memory_space<vmem>>, vector<8x128xf32>
    tpu.vector_store %arg4[%c0_7, %c0_8], %18 {strides = array<i32>} : memref<8x128xf32, #tpu.memory_space<vmem>>, vector<8x128xf32>,
    return
  }
  func.func @transform_0(%arg0: i32, %arg1: i32) -> (i32, i32) {
    %c0_i32 = arith.constant 0 : i32
    %c0_i32_0 = arith.constant 0 : i32
    return %arg0, %c0_i32 : i32, i32
  }
  func.func @transform_1(%arg0: i32, %arg1: i32) -> (i32, i32) {
    %c0_i32 = arith.constant 0 : i32
    %c0_i32_0 = arith.constant 0 : i32
    return %c0_i32, %arg1 : i32, i32
  }
  func.func @transform_2(%arg0: i32, %arg1: i32) -> (i32, i32) {
    %c0_i32 = arith.constant 0 : i32
    return %arg0, %arg1 : i32, i32
  }
}

</mosaic_0001>

<llo_original>
// kernel: normed_linear.1
$region0: #{normed_linear.1}
  #allocation0 [shape = 'u32[]', space=smem, size = 0x4, offset = 0x4, fixed_abs, tag = 'smem constant byte address 0x4 - core index']
  #allocation1 [shape = 'u32[144,128]{1,0:T(1,128)}', space=vmem, size = 0x12000, scoped, tag = 'internal scratch']
  %s0 = inlined_call_operand.vmem [shape: f32[8,32], index: 0, kind: input, shape index: {}]
  %s1 = inlined_call_operand.vmem [shape: f32[32,128], index: 1, kind: input, shape index: {}]
  %s2 = inlined_call_operand.hbm [shape: f32[8,128], index: 2, kind: output, shape index: {}]
  %s3 = sld [smem:[#allocation0]]
  $region18: #{normed_linear.1} parent=0
    _
  %s5 = ssub.s32 1, %s3
  %s6 = scalar_select 0, %s5, %s3
  $region1: #{normed_linear.1} parent=0
    #allocation2 [shape = 'u8[4096]{0}', space=vmem, size = 0x1000, scoped, tag = 'output window, operand 0, single buffered']
    #allocation3 [shape = 's32[1]{0}', space=sflag, size = 0x4, scoped, tag = 'scoped memory for normed_linear.1']
    %7 = vsyncpa [#allocation3], 0
    // Predicated region
    $region2: #{normed_linear.1} parent=1 // pred_check
      _
    $region3: #{normed_linear.1} parent=1 // pred_check_branch
      %9 = sbr.rel (0) target = $region5
    $region4: #{normed_linear.1} parent=1 // pred_region
      _
    $region5: #{normed_linear.1} parent=1 // pred_fallthru
      _
    // Predicated region
    $region6: #{normed_linear.1} parent=1 // pred_check
      _
    $region7: #{normed_linear.1} parent=1 // pred_check_branch
      %11 = sbr.rel (0) target = $region9
    $region8: #{normed_linear.1} parent=1 // pred_region
      _
    $region9: #{normed_linear.1} parent=1 // pred_fallthru
      _
    %v12 = vld [vmem:[%s0] sm:$0xff]
    %v13 = vld [vmem:[%s1] sm:$0xff]
    %v14 = vld [vmem:[%s1 + $0x8] sm:$0xff]
    %v15 = vld [vmem:[%s1 + $0x10] sm:$0xff]
    %v16 = vld [vmem:[%s1 + $0x18] sm:$0xff]
    %vm17 = vcmask 261120
    %v19 = vsel %vm17, %v12, 0
    %21 = vmatprep.subr.mxu0 0.0
    %22 = vmatpush1.msra.mxu0 0.0
    %23 = vmatprep.subr.mxu0 0.0
    %24 = vmatpush1.msra.mxu0 0.0
    %25 = vmatprep.subr.mxu0 0.0
    %26 = vmatpush1.msra.mxu0 0.0
    %27 = vmatprep.subr.mxu0 0.0
    %28 = vmatpush1.msra.mxu0 0.0
    %29 = vmatprep.subr.mxu0 0.0
    %30 = vmatpush1.msra.mxu0 0.0
    %31 = vmatprep.subr.mxu0 0.0
    %32 = vmatpush1.msra.mxu0 0.0
    %33 = vmatprep.subr.mxu0 0.0
    %34 = vmatpush1.msra.mxu0 0.0
    %35 = vmatprep.subr.mxu0 0.0
    %36 = vmatpush1.msra.mxu0 0.0
    %37 = vmatprep.subr.mxu0 0.0
    %38 = vmatpush1.msra.mxu0 0.0
    %39 = vmatprep.subr.mxu0 0.0
    %40 = vmatpush1.msra.mxu0 0.0
    %41 = vmatprep.subr.mxu0 0.0
    %42 = vmatpush1.msra.mxu0 0.0
    %43 = vmatprep.subr.mxu0 0.0
    %44 = vmatpush1.msra.mxu0 0.0
    %45 = vmatprep.subr.mxu0 0.0
    %46 = vmatpush1.msra.mxu0 %v16
    %47 = vmatprep.subr.mxu0 0.0
    %48 = vmatpush1.msra.mxu0 %v15
    %49 = vmatprep.subr.mxu0 0.0
    %50 = vmatpush1.msra.mxu0 %v14
    %51 = vmatprep.subr.mxu0 0.0
    %52 = vmatpush1.msra.mxu0 %v13
    %53 = vmatprep.subr.mxu0 0.0
    %54 = vmatpush2.msra.mxu0 0.0
    %55 = vmatprep.subr.mxu0 0.0
    %56 = vmatpush2.msra.mxu0 0.0
    %57 = vmatprep.subr.mxu0 0.0
    %58 = vmatpush2.msra.mxu0 0.0
    %59 = vmatprep.subr.mxu0 0.0
    %60 = vmatpush2.msra.mxu0 0.0
    %61 = vmatprep.subr.mxu0 0.0
    %62 = vmatpush2.msra.mxu0 0.0
    %63 = vmatprep.subr.mxu0 0.0
    %64 = vmatpush2.msra.mxu0 0.0
    %65 = vmatprep.subr.mxu0 0.0
    %66 = vmatpush2.msra.mxu0 0.0
    %67 = vmatprep.subr.mxu0 0.0
    %68 = vmatpush2.msra.mxu0 0.0
    %69 = vmatprep.subr.mxu0 0.0
    %70 = vmatpush2.msra.mxu0 0.0
    %71 = vmatprep.subr.mxu0 0.0
    %72 = vmatpush2.msra.mxu0 0.0
    %73 = vmatprep.subr.mxu0 0.0
    %74 = vmatpush2.msra.mxu0 0.0
    %75 = vmatprep.subr.mxu0 0.0
    %76 = vmatpush2.msra.mxu0 0.0
    %77 = vmatprep.subr.mxu0 0.0
    %78 = vmatpush2.msra.mxu0 0.0
    %79 = vmatprep.subr.mxu0 0.0
    %80 = vmatpush2.msra.mxu0 0.0
    %81 = vmatprep.subr.mxu0 0.0
    %82 = vmatpush2.msra.mxu0 0.0
    %83 = vmatprep.subr.mxu0 0.0
    %84 = vmatpush2.msra.mxu0 0.0
    %85 = vmatprep.mubr.f32.mxu0 0.0
    %86 = vmatmul.mubr.f32.gmra.mxu0 %v19
    %v87 = vpop.f32.mrf.mxu0
    %v88 = vadd.f32 0.0, %v87
    %v89 = vpop.f32.mrf.mxu0
    %90 = vdwg.mxu0
    %v91 = vmul.f32 %v12, %v12
    %v92 = vsel %vm17, %v91, 0.0
    %93 = vadd.xlane.f32.xlu0 %v92
    %v94 = vpop.xlane.xlu0 %93
    %v95 = vmul.f32 %v13, %v13
    %v96 = vmul.f32 %v14, %v14
    %v97 = vmul.f32 %v15, %v15
    %v98 = vmul.f32 %v16, %v16
    %v99 = vadd.f32 %v95, %v96
    %v100 = vadd.f32 %v99, %v97
    %v101 = vadd.f32 %v100, %v98
    %v102 = vrot.slane %v101, 4
    %v103 = vadd.f32 %v101, %v102
    %v104 = vrot.slane %v103, 2
    %v105 = vadd.f32 %v103, %v104
    %v106 = vrot.slane %v105, 1
    %v107 = vadd.f32 %v105, %v106
    %v108 = vmax.f32 %v94, 1e-24
    %v109 = vrsqrt.pop %v108
    %v110 = vmax.f32 %v107, 1e-24
    %v111 = vrsqrt.pop %v110
    %v112 = vmul.f32 %v88, %v109
    %v113 = vmul.f32 %v112, %v111
    %114 = vst [vmem:[#allocation2] sm:$0xff] %v113
    // Predicated region
    $region10: #{normed_linear.1} parent=1 // pred_check
      _
    $region11: #{normed_linear.1} parent=1 // pred_check_branch
      %116 = sbr.rel (0) target = $region13
    $region12: #{normed_linear.1} parent=1 // pred_region
      %s118 = ssub.s32 128, 128
      %119 = vsyncadd [#allocation3], %s118
      %s121 = sshll.u32 [#allocation2], 4
      %s122 = int_to_ptr.vmem [resolvable:$true] %s121
      %124 = dma.vmem_to_hbm [thread:$0]  %s122, 128, %s2, [#allocation3]
    $region13: #{normed_linear.1} parent=1 // pred_fallthru
      _
    // Predicated region
    $region14: #{normed_linear.1} parent=1 // pred_check
      _
    $region15: #{normed_linear.1} parent=1 // pred_check_branch
      %126 = sbr.rel (0) target = $region17
    $region16: #{normed_linear.1} parent=1 // pred_region
      %127 = dma.done [#allocation3], 128
    $region17: #{normed_linear.1} parent=1 // pred_fallthru
      _
    %128 = vsyncpa [#allocation3], 1

</llo_original>
